<compile_context>
chip_gen: v5e
topology: v5e:2x2
jax: 0.10.0
libtpu: 0.0.40
codegen_flags: <defaults>
</compile_context>

<pallas_src>
import functools

import jax
import jax.numpy as jnp
from jax import lax
from jax.experimental import pallas as pl
from jax.experimental.pallas import tpu as pltpu

LANE = 128


def _dice_reduce_kernel(score_ref, label_ref, inter_ref, zsum_ref, ysum_ref, *,
                        n_classes, tr, lanes, n_rows, nblk_per_split,
                        do_softmax, needs_mask):
    """grid = (N, n_split, nblk_per_split); axis 2 is the accumulation axis."""
    s_idx = pl.program_id(1)
    b_idx = pl.program_id(2)

    @pl.when(b_idx == 0)
    def _():
        inter_ref[...] = jnp.zeros_like(inter_ref)
        zsum_ref[...] = jnp.zeros_like(zsum_ref)
        ysum_ref[...] = jnp.zeros_like(ysum_ref)

    s = score_ref[0].astype(jnp.float32)          # (C, TR, L), cast after load
    lab = label_ref[0].astype(jnp.int32)          # (TR, L), int8 in HBM

    valid = None
    if needs_mask:
        # Row-level validity (a row is either fully valid or fully invalid in
        # both the lane-dense and the native-W layouts).  Uses the *unclamped*
        # global block index so clamped duplicate blocks contribute nothing.
        gblk = s_idx * nblk_per_split + b_idx
        row = lax.broadcasted_iota(jnp.int32, (tr, lanes), 0)
        valid = (gblk * tr + row) < n_rows        # (TR, L) bool
        s = jnp.where(valid[None], s, 0.0)        # NaN-safe zeroing before exp/x*x

    if do_softmax:
        # Channel softmax fused into the kernel: EUP exp, one reciprocal/pixel.
        m = jnp.max(s, axis=0, keepdims=True)
        e = jnp.exp(s - m)
        inv = pl.reciprocal(jnp.sum(e, axis=0, keepdims=True), approx=False)
        s = e * inv
        if needs_mask:
            s = jnp.where(valid[None], s, 0.0)    # padded columns 1/C -> 0

    # Vectorized one-hot over classes; sublane-only reductions keep the lane axis.
    cls = lax.broadcasted_iota(jnp.int32, (n_classes, tr, lanes), 0)
    onehot = lab[None] == cls                     # (C, TR, L) bool
    if needs_mask:
        ones = jnp.where(jnp.logical_and(onehot, valid[None]), 1.0, 0.0)
    else:
        ones = jnp.where(onehot, 1.0, 0.0)

    inter_ref[0, 0] += jnp.sum(jnp.where(onehot, s, 0.0), axis=1)   # (C, L)
    zsum_ref[0, 0] += jnp.sum(s * s, axis=1)                        # (C, L)
    ysum_ref[0, 0] += jnp.sum(ones, axis=1)                         # (C, L)


def dice_loss(inputs, target, n_classes, weight=None, softmax=False,
              block_rows=None):
    N, C, H, W = inputs.shape
    assert C == n_classes, f"predict channels {C} != n_classes {n_classes}"
    HW = H * W

    # Layout choice: lane-dense flattened view when possible, else native rows.
    if HW % LANE == 0:
        R, L = HW // LANE, LANE
    else:
        R, L = H, W
    score = inputs.reshape(N, C, R, L)                       # free reshape, native dtype
    label_dtype = jnp.int8 if n_classes <= 127 else jnp.int32
    labels = target.reshape(N, R, L).astype(label_dtype)     # small tensor, 4x fewer bytes

    # Dtype-aware block sizing with explicit VMEM accounting.
    isz = inputs.dtype.itemsize
    try:
        vmem_cap = pltpu.get_tpu_info().vmem_capacity_bytes
    except Exception:
        vmem_cap = 128 * 1024 * 1024
    vmem_limit = int(min(max(vmem_cap - 16 * 2**20, 32 * 2**20), 64 * 2**20))
    # Per-row bytes: 2x double-buffered (score + labels) + ~2 block-sized f32 temps.
    per_row = 2 * (C * L * isz + L) + 2 * (C * L * 4)
    tr_cap = max(32, min(4096, ((vmem_limit // 2) // per_row) // 32 * 32))
    if block_rows is not None:                               # test / tuning override
        tr_cap = max(32, (block_rows // 32) * 32)
    if R <= tr_cap:
        tr, nblk_total = R, 1                                # full-dim block (any size)
    else:
        tr = tr_cap                                          # multiple of 32 (int8 tiling)
        nblk_total = pl.cdiv(R, tr)

    # v7x has 2 TensorCores: when the batch axis can't feed both, split the
    # row-block axis across cores (harmless serial loop on v5e/v6e).
    n_split = 2 if (N % 2 == 1 and nblk_total >= 2) else 1
    nps = pl.cdiv(nblk_total, n_split)
    needs_mask = (n_split * nps * tr) != R

    kernel = functools.partial(
        _dice_reduce_kernel, n_classes=C, tr=tr, lanes=L, n_rows=R,
        nblk_per_split=nps, do_softmax=bool(softmax), needs_mask=needs_mask)

    last_blk = nblk_total - 1
    score_map = lambda n, s, b: (n, 0, jnp.minimum(s * nps + b, last_blk), 0)
    label_map = lambda n, s, b: (n, jnp.minimum(s * nps + b, last_blk), 0)
    acc_spec = pl.BlockSpec((1, 1, C, L), lambda n, s, b: (n, s, 0, 0))
    out_shape = [jax.ShapeDtypeStruct((N, n_split, C, L), jnp.float32)
                 for _ in range(3)]

    inter, zsum, ysum = pl.pallas_call(
        kernel,
        out_shape=out_shape,
        grid=(N, n_split, nps),
        in_specs=[
            pl.BlockSpec((1, C, tr, L), score_map),   # scores, native dtype
            pl.BlockSpec((1, tr, L), label_map),      # labels, int8, read once
        ],
        out_specs=[acc_spec, acc_spec, acc_spec],
        compiler_params=pltpu.CompilerParams(
            dimension_semantics=("parallel", "parallel", "arbitrary"),
            vmem_limit_bytes=vmem_limit),
    )(score, labels)

    # Tiny final reductions (batch, split halves, 128 lanes) + dice formula.
    intersect = jnp.sum(inter, axis=(0, 1, 3))
    z_sum = jnp.sum(zsum, axis=(0, 1, 3))
    y_sum = jnp.sum(ysum, axis=(0, 1, 3))

    smooth = 1e-5
    dice = 1.0 - (2.0 * intersect + smooth) / (z_sum + y_sum + smooth)

    if weight is None:
        w = jnp.ones((n_classes,), jnp.float32)
    else:
        w = jnp.asarray(weight, jnp.float32)
    # TODO(synk): PyTorch also builds a host-side `class_wise_dice` list via
    # .item(); only the returned loss is reproduced here.
    return jnp.sum(dice * w) / n_classes


def _dice_loss_ref(inputs, target, n_classes, weight=None, softmax=False):
    """Pure-JAX reference mirroring the PyTorch module exactly."""
    if softmax:
        inputs = jax.nn.softmax(inputs, axis=1)
    onehot = jnp.stack([(target == i) for i in range(n_classes)], axis=1).astype(jnp.float32)
    if weight is None:
        weight = [1.0] * n_classes
    smooth = 1e-5
    loss = 0.0
    for i in range(n_classes):
        score = inputs[:, i]
        t = onehot[:, i]
        intersect = jnp.sum(score * t)
        y_sum = jnp.sum(t * t)
        z_sum = jnp.sum(score * score)
        d = 1.0 - (2.0 * intersect + smooth) / (z_sum + y_sum + smooth)
        loss = loss + d * weight[i]
    return loss / n_classes


def _check(name, out, ref):
    out = jax.block_until_ready(out)
    ref = jax.block_until_ready(ref)
    assert jnp.allclose(out, ref, rtol=1e-4, atol=1e-5), (name, out, ref)


if __name__ == "__main__":
    key = jax.random.PRNGKey(0)
    k1, k2, k3, k4, k5, k6, k7, k8 = jax.random.split(key, 8)

    # Test 1: batch=2, classes=4, 16x16 (H*W % 128 == 0 -> lane-dense view),
    # fused channel softmax, single block, no mask.
    N, C, H, W = 2, 4, 16, 16
    x1 = jax.random.normal(k1, (N, C, H, W), dtype=jnp.float32)
    t1 = jax.random.randint(k2, (N, H, W), 0, C, dtype=jnp.int32)
    _check("t1", dice_loss(x1, t1, n_classes=C, softmax=True),
           _dice_loss_ref(x1, t1, n_classes=C, softmax=True))

    # Test 2: odd spatial size (native (H, W) layout, full-dim block, no pad copy),
    # per-class weights, no softmax.
    x2 = jax.random.uniform(k3, (1, 3, 10, 13), dtype=jnp.float32)
    t2 = jax.random.randint(k4, (1, 10, 13), 0, 3, dtype=jnp.int32)
    w2 = [0.5, 1.0, 1.5]
    _check("t2", dice_loss(x2, t2, n_classes=3, weight=w2, softmax=False),
           _dice_loss_ref(x2, t2, n_classes=3, weight=w2, softmax=False))

    # Test 3: native ragged layout + softmax + N=1 two-way split of the row
    # axis (clamped out-of-range blocks + in-kernel validity mask exercised).
    x3 = jax.random.normal(k5, (1, 3, 70, 13), dtype=jnp.float32)
    t3 = jax.random.randint(k6, (1, 70, 13), 0, 3, dtype=jnp.int32)
    _check("t3", dice_loss(x3, t3, n_classes=3, softmax=True, block_rows=32),
           _dice_loss_ref(x3, t3, n_classes=3, softmax=True))

    # Test 4: lane-dense layout with ragged grid tail + softmax + split.
    x4 = jax.random.normal(k7, (1, 4, 65, 128), dtype=jnp.float32)
    t4 = jax.random.randint(k8, (1, 65, 128), 0, 4, dtype=jnp.int32)
    _check("t4", dice_loss(x4, t4, n_classes=4, softmax=True, block_rows=32),
           _dice_loss_ref(x4, t4, n_classes=4, softmax=True))

    print("KERNEL_OK")
</pallas_src>

<mosaic_0001>
module attributes {stable_mosaic.version = 11 : i64} {
  func.func @_dice_reduce_kernel(%arg0: i32, %arg1: i32, %arg2: i32, %arg3: memref<1x4x2x128xf32, #tpu.memory_space<vmem>>, %arg4: memref<1x2x128xi8, #tpu.memory_space<vmem>>, %arg5: memref<1x1x4x128xf32, #tpu.memory_space<vmem>>, %arg6: memref<1x1x4x128xf32, #tpu.memory_space<vmem>>, %arg7: memref<1x1x4x128xf32, #tpu.memory_space<vmem>>) attributes {dimension_semantics = [#tpu.dimension_semantics<parallel>, #tpu.dimension_semantics<parallel>, #tpu.dimension_semantics<arbitrary>], iteration_bounds = array<i64: 2, 1, 1>, scalar_prefetch = 0 : i64, scratch_operands = 0 : i64, tpu.core_type = #tpu.core_type<tc>, window_params = [{transform_indices = @transform_0, window_bounds = array<i64: 1, 4, 2, 128>}, {transform_indices = @transform_1, window_bounds = array<i64: 1, 2, 128>}, {transform_indices = @transform_2, window_bounds = array<i64: 1, 1, 4, 128>}, {transform_indices = @transform_3, window_bounds = array<i64: 1, 1, 4, 128>}, {transform_indices = @transform_4, window_bounds = array<i64: 1, 1, 4, 128>}]} {
    %c0_i32 = arith.constant 0 : i32
    %0 = arith.cmpi eq, %arg2, %c0_i32 : i32
    %1 = arith.extui %0 : i1 to i32
    %c0_i32_0 = arith.constant 0 : i32
    %2 = arith.cmpi ne, %1, %c0_i32_0 : i32
    scf.if %2 {
      %cst_38 = arith.constant 0.000000e+00 : f32
      %49 = vector.broadcast %cst_38 : f32 to vector<1x1x4x128xf32>
      %c0_39 = arith.constant 0 : index
      %c0_40 = arith.constant 0 : index
      %c0_41 = arith.constant 0 : index
      %c0_42 = arith.constant 0 : index
      %50 = vector.load %arg5[%c0_39, %c0_40, %c0_41, %c0_42] : memref<1x1x4x128xf32, #tpu.memory_space<vmem>>, vector<1x1x4x128xf32>
      tpu.vector_store %arg5[%c0_39, %c0_40, %c0_41, %c0_42], %49 {strides = array<i32>} : memref<1x1x4x128xf32, #tpu.memory_space<vmem>>, vector<1x1x4x128xf32>,
      %cst_43 = arith.constant 0.000000e+00 : f32
      %51 = vector.broadcast %cst_43 : f32 to vector<1x1x4x128xf32>
      %c0_44 = arith.constant 0 : index
      %c0_45 = arith.constant 0 : index
      %c0_46 = arith.constant 0 : index
      %c0_47 = arith.constant 0 : index
      %52 = vector.load %arg6[%c0_44, %c0_45, %c0_46, %c0_47] : memref<1x1x4x128xf32, #tpu.memory_space<vmem>>, vector<1x1x4x128xf32>
      tpu.vector_store %arg6[%c0_44, %c0_45, %c0_46, %c0_47], %51 {strides = array<i32>} : memref<1x1x4x128xf32, #tpu.memory_space<vmem>>, vector<1x1x4x128xf32>,
      %cst_48 = arith.constant 0.000000e+00 : f32
      %53 = vector.broadcast %cst_48 : f32 to vector<1x1x4x128xf32>
      %c0_49 = arith.constant 0 : index
      %c0_50 = arith.constant 0 : index
      %c0_51 = arith.constant 0 : index
      %c0_52 = arith.constant 0 : index
      %54 = vector.load %arg7[%c0_49, %c0_50, %c0_51, %c0_52] : memref<1x1x4x128xf32, #tpu.memory_space<vmem>>, vector<1x1x4x128xf32>
      tpu.vector_store %arg7[%c0_49, %c0_50, %c0_51, %c0_52], %53 {strides = array<i32>} : memref<1x1x4x128xf32, #tpu.memory_space<vmem>>, vector<1x1x4x128xf32>,
    } else {
    }
    %c0 = arith.constant 0 : index
    %c0_1 = arith.constant 0 : index
    %c0_2 = arith.constant 0 : index
    %c0_3 = arith.constant 0 : index
    %3 = vector.load %arg3[%c0, %c0_1, %c0_2, %c0_3] : memref<1x4x2x128xf32, #tpu.memory_space<vmem>>, vector<1x4x2x128xf32>
    %4 = vector.shape_cast %3 : vector<1x4x2x128xf32> to vector<4x2x128xf32>
    %c0_4 = arith.constant 0 : index
    %c0_5 = arith.constant 0 : index
    %c0_6 = arith.constant 0 : index
    %5 = vector.load %arg4[%c0_4, %c0_5, %c0_6] : memref<1x2x128xi8, #tpu.memory_space<vmem>>, vector<1x2x128xi8>
    %6 = vector.shape_cast %5 : vector<1x2x128xi8> to vector<2x128xi8>
    %7 = arith.extsi %6 : vector<2x128xi8> to vector<2x128xi32>
    %cst = arith.constant dense<0xFF800000> : vector<2x128xf32>
    %8 = vector.multi_reduction <maximumf>, %4, %cst [0] : vector<4x2x128xf32> to vector<2x128xf32>
    %9 = vector.shape_cast %8 : vector<2x128xf32> to vector<1x2x128xf32>
    %10 = vector.broadcast %9 : vector<1x2x128xf32> to vector<4x2x128xf32>
    %11 = arith.subf %4, %10 : vector<4x2x128xf32>
    %12 = math.exp %11 : vector<4x2x128xf32>
    %cst_7 = arith.constant dense<0.000000e+00> : vector<2x128xf32>
    %13 = vector.multi_reduction <add>, %12, %cst_7 [0] : vector<4x2x128xf32> to vector<2x128xf32>
    %14 = vector.shape_cast %13 : vector<2x128xf32> to vector<1x2x128xf32>
    %15 = tpu.reciprocal %14 : vector<1x2x128xf32> -> vector<1x2x128xf32>
    %16 = vector.broadcast %15 : vector<1x2x128xf32> to vector<4x2x128xf32>
    %17 = arith.mulf %12, %16 : vector<4x2x128xf32>
    %18 = tpu.iota {dimensions = array<i32: 0>} : vector<4x2x128xi32>
    %19 = vector.shape_cast %7 : vector<2x128xi32> to vector<1x2x128xi32>
    %20 = vector.broadcast %19 : vector<1x2x128xi32> to vector<4x2x128xi32>
    %21 = arith.cmpi eq, %20, %18 : vector<4x2x128xi32>
    %cst_8 = arith.constant 1.000000e+00 : f32
    %cst_9 = arith.constant 0.000000e+00 : f32
    %22 = vector.broadcast %cst_8 : f32 to vector<4x2x128xf32>
    %23 = vector.broadcast %cst_9 : f32 to vector<4x2x128xf32>
    %24 = arith.select %21, %22, %23 : vector<4x2x128xi1>, vector<4x2x128xf32>
    %c0_10 = arith.constant 0 : index
    %c0_11 = arith.constant 0 : index
    %c0_12 = arith.constant 0 : index
    %c0_13 = arith.constant 0 : index
    %25 = vector.load %arg5[%c0_10, %c0_11, %c0_12, %c0_13] : memref<1x1x4x128xf32, #tpu.memory_space<vmem>>, vector<1x1x4x128xf32>
    %26 = vector.shape_cast %25 : vector<1x1x4x128xf32> to vector<4x128xf32>
    %cst_14 = arith.constant 0.000000e+00 : f32
    %27 = vector.broadcast %cst_14 : f32 to vector<4x2x128xf32>
    %28 = arith.select %21, %17, %27 : vector<4x2x128xi1>, vector<4x2x128xf32>
    %cst_15 = arith.constant dense<0.000000e+00> : vector<4x128xf32>
    %29 = vector.multi_reduction <add>, %28, %cst_15 [1] : vector<4x2x128xf32> to vector<4x128xf32>
    %30 = arith.addf %26, %29 : vector<4x128xf32>
    %c0_16 = arith.constant 0 : index
    %c0_17 = arith.constant 0 : index
    %c0_18 = arith.constant 0 : index
    %c0_19 = arith.constant 0 : index
    %31 = vector.load %arg5[%c0_16, %c0_17, %c0_18, %c0_19] : memref<1x1x4x128xf32, #tpu.memory_space<vmem>>, vector<1x1x4x128xf32>
    %32 = vector.shape_cast %31 : vector<1x1x4x128xf32> to vector<4x128xf32>
    %33 = vector.shape_cast %30 : vector<4x128xf32> to vector<1x1x4x128xf32>
    tpu.vector_store %arg5[%c0_16, %c0_17, %c0_18, %c0_19], %33 {strides = array<i32>} : memref<1x1x4x128xf32, #tpu.memory_space<vmem>>, vector<1x1x4x128xf32>,
    %c0_20 = arith.constant 0 : index
    %c0_21 = arith.constant 0 : index
    %c0_22 = arith.constant 0 : index
    %c0_23 = arith.constant 0 : index
    %34 = vector.load %arg6[%c0_20, %c0_21, %c0_22, %c0_23] : memref<1x1x4x128xf32, #tpu.memory_space<vmem>>, vector<1x1x4x128xf32>
    %35 = vector.shape_cast %34 : vector<1x1x4x128xf32> to vector<4x128xf32>
    %36 = arith.mulf %17, %17 : vector<4x2x128xf32>
    %cst_24 = arith.constant dense<0.000000e+00> : vector<4x128xf32>
    %37 = vector.multi_reduction <add>, %36, %cst_24 [1] : vector<4x2x128xf32> to vector<4x128xf32>
    %38 = arith.addf %35, %37 : vector<4x128xf32>
    %c0_25 = arith.constant 0 : index
    %c0_26 = arith.constant 0 : index
    %c0_27 = arith.constant 0 : index
    %c0_28 = arith.constant 0 : index
    %39 = vector.load %arg6[%c0_25, %c0_26, %c0_27, %c0_28] : memref<1x1x4x128xf32, #tpu.memory_space<vmem>>, vector<1x1x4x128xf32>
    %40 = vector.shape_cast %39 : vector<1x1x4x128xf32> to vector<4x128xf32>
    %41 = vector.shape_cast %38 : vector<4x128xf32> to vector<1x1x4x128xf32>
    tpu.vector_store %arg6[%c0_25, %c0_26, %c0_27, %c0_28], %41 {strides = array<i32>} : memref<1x1x4x128xf32, #tpu.memory_space<vmem>>, vector<1x1x4x128xf32>,
    %c0_29 = arith.constant 0 : index
    %c0_30 = arith.constant 0 : index
    %c0_31 = arith.constant 0 : index
    %c0_32 = arith.constant 0 : index
    %42 = vector.load %arg7[%c0_29, %c0_30, %c0_31, %c0_32] : memref<1x1x4x128xf32, #tpu.memory_space<vmem>>, vector<1x1x4x128xf32>
    %43 = vector.shape_cast %42 : vector<1x1x4x128xf32> to vector<4x128xf32>
    %cst_33 = arith.constant dense<0.000000e+00> : vector<4x128xf32>
    %44 = vector.multi_reduction <add>, %24, %cst_33 [1] : vector<4x2x128xf32> to vector<4x128xf32>
    %45 = arith.addf %43, %44 : vector<4x128xf32>
    %c0_34 = arith.constant 0 : index
    %c0_35 = arith.constant 0 : index
    %c0_36 = arith.constant 0 : index
    %c0_37 = arith.constant 0 : index
    %46 = vector.load %arg7[%c0_34, %c0_35, %c0_36, %c0_37] : memref<1x1x4x128xf32, #tpu.memory_space<vmem>>, vector<1x1x4x128xf32>
    %47 = vector.shape_cast %46 : vector<1x1x4x128xf32> to vector<4x128xf32>
    %48 = vector.shape_cast %45 : vector<4x128xf32> to vector<1x1x4x128xf32>
    tpu.vector_store %arg7[%c0_34, %c0_35, %c0_36, %c0_37], %48 {strides = array<i32>} : memref<1x1x4x128xf32, #tpu.memory_space<vmem>>, vector<1x1x4x128xf32>,
    return
  }
  func.func @transform_0(%arg0: i32, %arg1: i32, %arg2: i32) -> (i32, i32, i32, i32) {
    %c1_i32 = arith.constant 1 : i32
    %0 = arith.muli %arg1, %c1_i32 : i32
    %1 = arith.addi %0, %arg2 : i32
    %c0_i32 = arith.constant 0 : i32
    %2 = arith.minsi %1, %c0_i32 : i32
    %c0_i32_0 = arith.constant 0 : i32
    %c0_i32_1 = arith.constant 0 : i32
    %c0_i32_2 = arith.constant 0 : i32
    return %arg0, %c0_i32_0, %2, %c0_i32_1 : i32, i32, i32, i32
  }
  func.func @transform_1(%arg0: i32, %arg1: i32, %arg2: i32) -> (i32, i32, i32) {
    %c1_i32 = arith.constant 1 : i32
    %0 = arith.muli %arg1, %c1_i32 : i32
    %1 = arith.addi %0, %arg2 : i32
    %c0_i32 = arith.constant 0 : i32
    %2 = arith.minsi %1, %c0_i32 : i32
    %c0_i32_0 = arith.constant 0 : i32
    %c0_i32_1 = arith.constant 0 : i32
    return %arg0, %2, %c0_i32_0 : i32, i32, i32
  }
  func.func @transform_2(%arg0: i32, %arg1: i32, %arg2: i32) -> (i32, i32, i32, i32) {
    %c0_i32 = arith.constant 0 : i32
    %c0_i32_0 = arith.constant 0 : i32
    %c0_i32_1 = arith.constant 0 : i32
    return %arg0, %arg1, %c0_i32, %c0_i32_0 : i32, i32, i32, i32
  }
  func.func @transform_3(%arg0: i32, %arg1: i32, %arg2: i32) -> (i32, i32, i32, i32) {
    %c0_i32 = arith.constant 0 : i32
    %c0_i32_0 = arith.constant 0 : i32
    %c0_i32_1 = arith.constant 0 : i32
    return %arg0, %arg1, %c0_i32, %c0_i32_0 : i32, i32, i32, i32
  }
  func.func @transform_4(%arg0: i32, %arg1: i32, %arg2: i32) -> (i32, i32, i32, i32) {
    %c0_i32 = arith.constant 0 : i32
    %c0_i32_0 = arith.constant 0 : i32
    %c0_i32_1 = arith.constant 0 : i32
    return %arg0, %arg1, %c0_i32, %c0_i32_0 : i32, i32, i32, i32
  }
}

</mosaic_0001>

<llo_original>
// kernel: tpu_custom_call.1
$region0: #{tpu_custom_call.1}
  #allocation0 [shape = 'u32[]', space=smem, size = 0x4, offset = 0x4, fixed_abs, tag = 'smem constant byte address 0x4 - core index']
  #allocation1 [shape = 'u32[72,128]{1,0:T(1,128)}', space=vmem, size = 0x9000, scoped, tag = 'internal scratch']
  %s0 = inlined_call_operand.hbm [shape: f32[2,4,2,128], index: 0, kind: input, shape index: {}]
  %s1 = inlined_call_operand.hbm [shape: s8[2,2,128], index: 1, kind: input, shape index: {}]
  %s2 = inlined_call_operand.hbm [shape: f32[2,1,4,128], index: 2, kind: output, shape index: {0}]
  %s3 = inlined_call_operand.hbm [shape: f32[2,1,4,128], index: 3, kind: output, shape index: {1}]
  %s4 = inlined_call_operand.hbm [shape: f32[2,1,4,128], index: 4, kind: output, shape index: {2}]
  %5 = xla_tuple %s2, %s3, %s4
  %s6 = sld [smem:[#allocation0]]
  $region69: #{tpu_custom_call.1} parent=0
    _
  %s8 = ssub.s32 1, %s6
  %s9 = scalar_select 0, %s8, %s6
  $region1: #{tpu_custom_call.1} parent=0
    #allocation2 [shape = 'u8[8192]{0}', space=vmem, size = 0x2000, scoped, tag = 'input window, operand 0']
    #allocation3 [shape = 's32[2]{0}', space=sflag, size = 0x8, scoped, tag = 'scoped memory for tpu_custom_call.1']
    #allocation4 [shape = 's32[2]{0}', space=sflag, size = 0x8, scoped, tag = 'scoped memory for tpu_custom_call.1']
    #allocation5 [shape = 'u8[1024]{0}', space=vmem, size = 0x400, scoped, tag = 'input window, operand 1']
    #allocation6 [shape = 's32[2]{0}', space=sflag, size = 0x8, scoped, tag = 'scoped memory for tpu_custom_call.1']
    #allocation7 [shape = 'u8[4096]{0}', space=vmem, size = 0x1000, scoped, tag = 'output window, operand 0']
    #allocation8 [shape = 'u8[4096]{0}', space=vmem, size = 0x1000, scoped, tag = 'output window, operand 1']
    #allocation9 [shape = 's32[2]{0}', space=sflag, size = 0x8, scoped, tag = 'scoped memory for tpu_custom_call.1']
    #allocation10 [shape = 'u8[4096]{0}', space=vmem, size = 0x1000, scoped, tag = 'output window, operand 2']
    %10 = vsyncpa [#allocation3], 0
    %s11 = scalar_lea.sflag [#allocation3], 1
    %12 = vsyncpa %s11, 0
    %13 = vsyncpa [#allocation6], 0
    %s14 = scalar_lea.sflag [#allocation6], 1
    %15 = vsyncpa %s14, 0
    %16 = vsyncpa [#allocation4], 0
    %s17 = scalar_lea.sflag [#allocation4], 1
    %18 = vsyncpa %s17, 0
    %19 = vsyncpa [#allocation9], 0
    %s20 = scalar_lea.sflag [#allocation9], 1
    %21 = vsyncpa %s20, 0
    loop: start=0, step=1, limit=4
    $region2: #{tpu_custom_call.1} parent=1 // loop_pre_header
      _
    $region3: #{tpu_custom_call.1} parent=1 // loop_header
      %s23 = sphi 0, %s27
      %p24 = scmp.ge.s32.totalorder %s23, 4
      %s30 = sphi 0, %s49
      %s31 = sphi 0, %s45
      %s32 = sphi 0, %s41
      %s33 = sphi 0, %s30
      %s34 = sphi 0, %s31
      %s35 = sphi 0, %s32
      %s36 = sphi 0, %s33
      %s37 = sphi 0, %s34
      %s38 = sphi 0, %s35
      %s60 = sphi 0, %s62
      %s63 = sphi 0, %s60
      %s64 = sphi 0, %s63
      %s80 = sphi 0, %s64
      %s94 = sphi 0, %s96
      %s97 = sphi 0, %s94
      %s98 = sphi 0, %s97
      %s114 = sphi 0, %s98
      %s122 = sphi 0, %s124
      %s125 = sphi 0, %s122
      %s126 = sphi 0, %s125
      %s142 = sphi 0, %s126
      %s150 = sphi 0, %s152
      %s153 = sphi 0, %s150
      %s154 = sphi 0, %s153
      %s170 = sphi 0, %s154
      %s178 = sphi 0, %s180
      %s181 = sphi 0, %s178
      %s182 = sphi 0, %s181
      %s198 = sphi 0, %s182
    $region4: #{tpu_custom_call.1} parent=1 // loop_header_branch
      %26 = sbr.rel (%p24) target = $region8
    $region5: #{tpu_custom_call.1} parent=1 // loop_body
      %s28 = ssub.s32 %s23, 1
      %s29 = ssub.s32 %s23, 2
      %s39 = sadd.s32 1, %s32
      %p40 = scmp.ge.s32.totalorder %s39, 1
      %s41 = scalar_select %p40, 0, %s39
      %s42 = sadd.s32 1, %s31
      %s43 = scalar_select %p40, %s42, %s31
      %p44 = scmp.ge.s32.totalorder %s43, 1
      %s45 = scalar_select %p44, 0, %s43
      %s46 = sadd.s32 1, %s30
      %s47 = scalar_select %p44, %s46, %s30
      %p48 = scmp.ge.s32.totalorder %s47, 2
      %s49 = scalar_select %p48, 0, %s47
      %s50 = sadd.s32 %s31, %s32
      %p51 = scmp.lt.s32.totalorder %s50, 0
      %s52 = scalar_select %p51, %s50, 0
      %s53 = sadd.s32 %s45, %s41
      %p54 = scmp.lt.s32.totalorder %s53, 0
      %s55 = scalar_select %p54, %s53, 0
      %s56 = ssub.s32 %s30, %s49
      %s57 = ssub.s32 %s52, %s55
      %s58 = sor.u32 %s56, %s57
      %p59 = scmp.eq.s32.totalorder %s58, 0
      %s61 = sadd.s32 %s60, 1
      %s62 = scalar_select %p59, %s60, %s61
      %p65 = pneg %p59
      %p66 = scmp.eq.s32.totalorder %s23, 1
      %p67 = por %p65, %p66
      %p68 = scmp.ne.s32.totalorder %s60, %s63
      %p69 = scmp.eq.s32.totalorder %s23, 0
      %p70 = por %p68, %p69
      %p71 = scmp.ne.s32.totalorder %s60, %s63
      %p72 = scmp.eq.s32.totalorder %s28, 1
      %p73 = por %p71, %p72
      %p74 = scmp.ne.s32.totalorder %s63, %s64
      %p75 = scmp.eq.s32.totalorder %s28, 0
      %p76 = por %p74, %p75
      %p77 = scmp.ne.s32.totalorder %s63, %s64
      %p78 = scmp.eq.s32.totalorder %s29, 1
      %p79 = por %p77, %p78
      %p81 = scmp.ne.s32.totalorder %s64, %s80
      %p82 = scmp.eq.s32.totalorder %s29, 0
      %p83 = por %p81, %p82
      %s84 = sadd.s32 %s31, %s32
      %p85 = scmp.lt.s32.totalorder %s84, 0
      %s86 = scalar_select %p85, %s84, 0
      %s87 = sadd.s32 %s45, %s41
      %p88 = scmp.lt.s32.totalorder %s87, 0
      %s89 = scalar_select %p88, %s87, 0
      %s90 = ssub.s32 %s30, %s49
      %s91 = ssub.s32 %s86, %s89
      %s92 = sor.u32 %s90, %s91
      %p93 = scmp.eq.s32.totalorder %s92, 0
      %s95 = sadd.s32 %s94, 1
      %s96 = scalar_select %p93, %s94, %s95
      %p99 = pneg %p93
      %p100 = scmp.eq.s32.totalorder %s23, 1
      %p101 = por %p99, %p100
      %p102 = scmp.ne.s32.totalorder %s94, %s97
      %p103 = scmp.eq.s32.totalorder %s23, 0
      %p104 = por %p102, %p103
      %p105 = scmp.ne.s32.totalorder %s94, %s97
      %p106 = scmp.eq.s32.totalorder %s28, 1
      %p107 = por %p105, %p106
      %p108 = scmp.ne.s32.totalorder %s97, %s98
      %p109 = scmp.eq.s32.totalorder %s28, 0
      %p110 = por %p108, %p109
      %p111 = scmp.ne.s32.totalorder %s97, %s98
      %p112 = scmp.eq.s32.totalorder %s29, 1
      %p113 = por %p111, %p112
      %p115 = scmp.ne.s32.totalorder %s98, %s114
      %p116 = scmp.eq.s32.totalorder %s29, 0
      %p117 = por %p115, %p116
      %s118 = ssub.s32 %s30, %s49
      %s119 = ssub.s32 %s31, %s45
      %s120 = sor.u32 %s118, %s119
      %p121 = scmp.eq.s32.totalorder %s120, 0
      %s123 = sadd.s32 %s122, 1
      %s124 = scalar_select %p121, %s122, %s123
      %p127 = pneg %p121
      %p128 = scmp.eq.s32.totalorder %s23, 1
      %p129 = por %p127, %p128
      %p130 = scmp.ne.s32.totalorder %s122, %s125
      %p131 = scmp.eq.s32.totalorder %s23, 0
      %p132 = por %p130, %p131
      %p133 = scmp.ne.s32.totalorder %s122, %s125
      %p134 = scmp.eq.s32.totalorder %s28, 1
      %p135 = por %p133, %p134
      %p136 = scmp.ne.s32.totalorder %s125, %s126
      %p137 = scmp.eq.s32.totalorder %s28, 0
      %p138 = por %p136, %p137
      %p139 = scmp.ne.s32.totalorder %s125, %s126
      %p140 = scmp.eq.s32.totalorder %s29, 1
      %p141 = por %p139, %p140
      %p143 = scmp.ne.s32.totalorder %s126, %s142
      %p144 = scmp.eq.s32.totalorder %s29, 0
      %p145 = por %p143, %p144
      %s146 = ssub.s32 %s30, %s49
      %s147 = ssub.s32 %s31, %s45
      %s148 = sor.u32 %s146, %s147
      %p149 = scmp.eq.s32.totalorder %s148, 0
      %s151 = sadd.s32 %s150, 1
      %s152 = scalar_select %p149, %s150, %s151
      %p155 = pneg %p149
      %p156 = scmp.eq.s32.totalorder %s23, 1
      %p157 = por %p155, %p156
      %p158 = scmp.ne.s32.totalorder %s150, %s153
      %p159 = scmp.eq.s32.totalorder %s23, 0
      %p160 = por %p158, %p159
      %p161 = scmp.ne.s32.totalorder %s150, %s153
      %p162 = scmp.eq.s32.totalorder %s28, 1
      %p163 = por %p161, %p162
      %p164 = scmp.ne.s32.totalorder %s153, %s154
      %p165 = scmp.eq.s32.totalorder %s28, 0
      %p166 = por %p164, %p165
      %p167 = scmp.ne.s32.totalorder %s153, %s154
      %p168 = scmp.eq.s32.totalorder %s29, 1
      %p169 = por %p167, %p168
      %p171 = scmp.ne.s32.totalorder %s154, %s170
      %p172 = scmp.eq.s32.totalorder %s29, 0
      %p173 = por %p171, %p172
      %s174 = ssub.s32 %s30, %s49
      %s175 = ssub.s32 %s31, %s45
      %s176 = sor.u32 %s174, %s175
      %p177 = scmp.eq.s32.totalorder %s176, 0
      %s179 = sadd.s32 %s178, 1
      %s180 = scalar_select %p177, %s178, %s179
      %p183 = pneg %p177
      %p184 = scmp.eq.s32.totalorder %s23, 1
      %p185 = por %p183, %p184
      %p186 = scmp.ne.s32.totalorder %s178, %s181
      %p187 = scmp.eq.s32.totalorder %s23, 0
      %p188 = por %p186, %p187
      %p189 = scmp.ne.s32.totalorder %s178, %s181
      %p190 = scmp.eq.s32.totalorder %s28, 1
      %p191 = por %p189, %p190
      %p192 = scmp.ne.s32.totalorder %s181, %s182
      %p193 = scmp.eq.s32.totalorder %s28, 0
      %p194 = por %p192, %p193
      %p195 = scmp.ne.s32.totalorder %s181, %s182
      %p196 = scmp.eq.s32.totalorder %s29, 1
      %p197 = por %p195, %p196
      %p199 = scmp.ne.s32.totalorder %s182, %s198
      %p200 = scmp.eq.s32.totalorder %s29, 0
      %p201 = por %p199, %p200
      %p202 = scmp.le.s32.totalorder 1, %s23
      %p203 = scmp.lt.s32.totalorder %s23, 3
      %p204 = pnand %p202, %p203
      %p205 = pneg %p204
      // Predicated region
      $region9: #{tpu_custom_call.1} parent=5 // pred_check
        _
      $region10: #{tpu_custom_call.1} parent=5 // pred_check_branch
        %207 = sbr.rel (%p204) target = $region12
      $region11: #{tpu_custom_call.1} parent=5 // pred_region
        %s208 = ssub.s32 %s23, 1
      $region12: #{tpu_custom_call.1} parent=5 // pred_fallthru
        _
      %p209 = scmp.lt.s32.totalorder %s23, 2
      // Predicated region
      $region13: #{tpu_custom_call.1} parent=5 // pred_check
        %p210 = pneg %p209
      $region14: #{tpu_custom_call.1} parent=5 // pred_check_branch
        %212 = sbr.rel (%p210) target = $region16
      $region15: #{tpu_custom_call.1} parent=5 // pred_region
        // Predicated region
        $region17: #{tpu_custom_call.1} parent=15 // pred_check
          %p213 = pneg %p70
        $region18: #{tpu_custom_call.1} parent=15 // pred_check_branch
          %215 = sbr.rel (%p213) target = $region20
        $region19: #{tpu_custom_call.1} parent=15 // pred_region
          %s216 = sand.u32 %s60, 1
          %s217 = scalar_lea.sflag [#allocation3], %s216
          %s218 = sand.u32 %s60, 1
          %s219 = smul.addr %s218, 8
          %s220 = scalar_lea.vmem [#allocation2], %s219
          %s221 = sadd.s32 %s31, %s32
          %p222 = scmp.lt.s32.totalorder %s221, 0
          %s223 = scalar_select %p222, %s221, 0
          %225 = vsyncadd %s217, 0
          %s226 = smul.addr %s30, 4
          %s227 = sadd.s32 %s223, %s226
          %s228 = smul.addr %s227, 2
          %s229 = scalar_lea.hbm %s0, %s228
          %s230 = sshll.u32 %s229, 4
          %s231 = int_to_ptr.hbm [resolvable:$true] %s230
          %s232 = sshll.u32 %s220, 4
          %s233 = int_to_ptr.vmem [resolvable:$true] %s232
          %238 = dma.hbm_to_vmem [thread:$0]  %s231, 128, %s233, %s217, 32, 32, 2
        $region20: #{tpu_custom_call.1} parent=15 // pred_fallthru
          _
        // Predicated region
        $region21: #{tpu_custom_call.1} parent=15 // pred_check
          %p239 = pneg %p104
        $region22: #{tpu_custom_call.1} parent=15 // pred_check_branch
          %241 = sbr.rel (%p239) target = $region24
        $region23: #{tpu_custom_call.1} parent=15 // pred_region
          %s242 = sand.u32 %s94, 1
          %s243 = scalar_lea.sflag [#allocation6], %s242
          %s244 = sand.u32 %s94, 1
          %s245 = scalar_lea.vmem [#allocation5], %s244
          %s246 = sadd.s32 %s31, %s32
          %p247 = scmp.lt.s32.totalorder %s246, 0
          %s248 = scalar_select %p247, %s246, 0
          %250 = vsyncadd %s243, 0
          %s251 = sadd.s32 %s248, %s30
          %s252 = scalar_lea.hbm %s1, %s251
          %s254 = sshll.u32 %s252, 4
          %s255 = int_to_ptr.hbm [resolvable:$true] %s254
          %s256 = sshll.u32 %s245, 4
          %s257 = int_to_ptr.vmem [resolvable:$true] %s256
          %259 = dma.hbm_to_vmem [thread:$0]  %s255, 16, %s257, %s243
        $region24: #{tpu_custom_call.1} parent=15 // pred_fallthru
          _
      $region16: #{tpu_custom_call.1} parent=5 // pred_fallthru
        _
      %p260 = scmp.le.s32.totalorder 1, %s23
      %p261 = scmp.lt.s32.totalorder %s23, 3
      %p262 = pnand %p260, %p261
      %p263 = pneg %p262
      // Predicated region
      $region25: #{tpu_custom_call.1} parent=5 // pred_check
        _
      $region26: #{tpu_custom_call.1} parent=5 // pred_check_branch
        %265 = sbr.rel (%p262) target = $region28
      $region27: #{tpu_custom_call.1} parent=5 // pred_region
        %s266 = ssub.s32 %s23, 1
        %s267 = sand.u32 %s63, 1
        %s268 = scalar_lea.sflag [#allocation3], %s267
        %s269 = sand.u32 %s63, 1
        %s270 = smul.addr %s269, 8
        %s271 = scalar_lea.vmem [#allocation2], %s270
        // Predicated region
        $region29: #{tpu_custom_call.1} parent=27 // pred_check
          %p272 = pneg %p76
        $region30: #{tpu_custom_call.1} parent=27 // pred_check_branch
          %274 = sbr.rel (%p272) target = $region32
        $region31: #{tpu_custom_call.1} parent=27 // pred_region
          %276 = dma.done %s268, 128
        $region32: #{tpu_custom_call.1} parent=27 // pred_fallthru
          _
        %s277 = sand.u32 %s97, 1
        %s278 = scalar_lea.sflag [#allocation6], %s277
        %s279 = sand.u32 %s97, 1
        %s280 = scalar_lea.vmem [#allocation5], %s279
        // Predicated region
        $region33: #{tpu_custom_call.1} parent=27 // pred_check
          %p281 = pneg %p110
        $region34: #{tpu_custom_call.1} parent=27 // pred_check_branch
          %283 = sbr.rel (%p281) target = $region36
        $region35: #{tpu_custom_call.1} parent=27 // pred_region
          %285 = dma.done %s278, 16
        $region36: #{tpu_custom_call.1} parent=27 // pred_fallthru
          _
        %s286 = sand.u32 %s63, 1
        %s287 = scalar_lea.sflag [#allocation3], %s286
        %s288 = sand.u32 %s63, 1
        %s289 = smul.addr %s288, 8
        %s290 = scalar_lea.vmem [#allocation2], %s289
        %p291 = pneg %p76
        %p292 = pneg %p73
        %s293 = sand.u32 %s97, 1
        %s294 = scalar_lea.sflag [#allocation6], %s293
        %s295 = sand.u32 %s97, 1
        %s296 = scalar_lea.vmem [#allocation5], %s295
        %p297 = pneg %p110
        %p298 = pneg %p107
        %p299 = pneg %p138
        %p300 = pneg %p135
        %s301 = sand.u32 %s125, 1
        %s302 = scalar_lea.sflag [#allocation4], %s301
        %s303 = sand.u32 %s125, 1
        %s304 = smul.addr %s303, 4
        %s305 = scalar_lea.vmem [#allocation7], %s304
        %p306 = pneg %p166
        %p307 = pneg %p163
        %s308 = sand.u32 %s28, 1
        %s309 = scalar_lea.sflag [#allocation9], %s308
        %s310 = sand.u32 %s153, 1
        %s311 = smul.addr %s310, 4
        %s312 = scalar_lea.vmem [#allocation8], %s311
        %p313 = pneg %p194
        %p314 = pneg %p191
        %s315 = sand.u32 %s28, 1
        %s316 = scalar_lea.sflag [#allocation9], %s315
        %s317 = sand.u32 %s181, 1
        %s318 = smul.addr %s317, 4
        %s319 = scalar_lea.vmem [#allocation10], %s318
        %s320 = sadd.s32 %s34, %s35
        %p321 = scmp.lt.s32.totalorder %s320, 0
        %s322 = scalar_select %p321, %s320, 0
        %s323 = sadd.s32 %s34, %s35
        %p324 = scmp.lt.s32.totalorder %s323, 0
        %s325 = scalar_select %p324, %s323, 0
        %p326 = scmp.eq.s32.totalorder %s35, 0
        // Predicated region
        $region37: #{tpu_custom_call.1} parent=27 // pred_check
          %p327 = pneg %p326
        $region38: #{tpu_custom_call.1} parent=27 // pred_check_branch
          %329 = sbr.rel (%p327) target = $region40
        $region39: #{tpu_custom_call.1} parent=27 // pred_region
          %330 = vst [vmem:[%s305] sm:$0xf] 0.0
          %331 = vst [vmem:[%s312] sm:$0xf] 0.0
          %332 = vst [vmem:[%s319] sm:$0xf] 0.0
        $region40: #{tpu_custom_call.1} parent=27 // pred_fallthru
          _
        %v333 = vld [vmem:[%s271] sm:$0x3]
        %v334 = vld [vmem:[%s271 + $0x2] sm:$0x3]
        %v335 = vld [vmem:[%s271 + $0x4] sm:$0x3]
        %v336 = vld [vmem:[%s271 + $0x6] sm:$0x3]
        %v337 = vld [vmem:[%s280] sm:$0x1]
        %v338 = vunpack.c.0.s8 %v337
        %vm339 = vcmask 1041408
        %v340 = vsel %vm339, %v333, -inf
        %v341 = vsel %vm339, %v334, -inf
        %v342 = vsel %vm339, %v335, -inf
        %v343 = vsel %vm339, %v336, -inf
        %v344 = vmax.f32 %v340, %v341
        %v345 = vmax.f32 %v342, %v343
        %v346 = vmax.f32 %v344, %v345
        %v347 = vsub.f32 %v333, %v346
        %v348 = vsub.f32 %v334, %v346
        %v349 = vsub.f32 %v335, %v346
        %v350 = vsub.f32 %v336, %v346
        %v351 = vmul.f32 %v347, 1.442695
        %v352 = vpow.pop %v351
        %v353 = vmul.f32 %v348, 1.442695
        %v354 = vpow.pop %v353
        %v355 = vmul.f32 %v349, 1.442695
        %v356 = vpow.pop %v355
        %v357 = vmul.f32 %v350, 1.442695
        %v358 = vpow.pop %v357
        %v359 = vsel %vm339, %v352, 0.0
        %v360 = vsel %vm339, %v354, 0.0
        %v361 = vadd.f32 %v359, %v360
        %v362 = vsel %vm339, %v356, 0.0
        %v363 = vadd.f32 %v361, %v362
        %v364 = vsel %vm339, %v358, 0.0
        %v365 = vadd.f32 %v363, %v364
        %v366 = vrcp.pop %v365
        %v367 = vmul.f32 %v365, %v366
        %v368 = vsub.f32 1.0, %v367
        %v369 = vmul.f32 %v366, %v368
        %v370 = vadd.f32 %v366, %v369
        %vm371 = vweird.f32 %v365
        %vm372 = vweird.f32 %v366
        %vm373 = vmor %vm371, %vm372
        %v374 = vsel %vm373, %v366, %v370
        %v375 = vand.u32 2147483647, %v365
        %vm376 = vcmp.eq.f32.partialorder %v375, 8.507059e+37
        %v377 = vand.u32 %v365, 2147483648
        %v378 = vor.u32 1.1754944e-38, %v377
        %v379 = vsel %vm376, %v378, %v374
        %v380 = vmul.f32 %v352, %v379
        %v381 = vmul.f32 %v354, %v379
        %v382 = vmul.f32 %v356, %v379
        %v383 = vmul.f32 %v358, %v379
        %vm384 = vcmp.eq.s32.totalorder %v338, 0
        %vm385 = vcmp.eq.s32.totalorder %v338, 1
        %vm386 = vcmp.eq.s32.totalorder %v338, 2
        %vm387 = vcmp.eq.s32.totalorder %v338, 3
        %v388 = vsel %vm384, 1.0, 0.0
        %v389 = vsel %vm385, 1.0, 0.0
        %v390 = vsel %vm386, 1.0, 0.0
        %v391 = vsel %vm387, 1.0, 0.0
        %v392 = vld [vmem:[%s305] sm:$0xf]
        %v393 = vsel %vm384, %v380, 0.0
        %v394 = vsel %vm385, %v381, 0.0
        %v395 = vsel %vm386, %v382, 0.0
        %v396 = vsel %vm387, %v383, 0.0
        %v397 = vsel %vm339, %v393, 0.0
        %v398 = vrot.slane %v397, 4
        %v399 = vadd.f32 %v397, %v398
        %v400 = vrot.slane %v399, 2
        %v401 = vadd.f32 %v399, %v400
        %v402 = vrot.slane %v401, 1
        %v403 = vadd.f32 %v401, %v402
        %v404 = vsel %vm339, %v394, 0.0
        %v405 = vrot.slane %v404, 4
        %v406 = vadd.f32 %v404, %v405
        %v407 = vrot.slane %v406, 2
        %v408 = vadd.f32 %v406, %v407
        %v409 = vrot.slane %v408, 1
        %v410 = vadd.f32 %v408, %v409
        %v411 = vsel %vm339, %v395, 0.0
        %v412 = vrot.slane %v411, 4
        %v413 = vadd.f32 %v411, %v412
        %v414 = vrot.slane %v413, 2
        %v415 = vadd.f32 %v413, %v414
        %v416 = vrot.slane %v415, 1
        %v417 = vadd.f32 %v415, %v416
        %v418 = vsel %vm339, %v396, 0.0
        %v419 = vrot.slane %v418, 4
        %v420 = vadd.f32 %v418, %v419
        %v421 = vrot.slane %v420, 2
        %v422 = vadd.f32 %v420, %v421
        %v423 = vrot.slane %v422, 1
        %v424 = vadd.f32 %v422, %v423
        %vm429 = vcmask 1041409
        %v430 = vsel %vm429, %v410, %v403
        %vm431 = vcmask 1042434
        %v432 = vsel %vm431, %v417, %v430
        %vm433 = vcmask 1043459
        %v434 = vsel %vm433, %v424, %v432
        %v436 = vadd.f32 %v392, %v434
        %437 = vst [vmem:[%s305] sm:$0xf] %v436
        %v438 = vld [vmem:[%s312] sm:$0xf]
        %v439 = vmul.f32 %v380, %v380
        %v440 = vmul.f32 %v381, %v381
        %v441 = vmul.f32 %v382, %v382
        %v442 = vmul.f32 %v383, %v383
        %v443 = vsel %vm339, %v439, 0.0
        %v444 = vrot.slane %v443, 4
        %v445 = vadd.f32 %v443, %v444
        %v446 = vrot.slane %v445, 2
        %v447 = vadd.f32 %v445, %v446
        %v448 = vrot.slane %v447, 1
        %v449 = vadd.f32 %v447, %v448
        %v450 = vsel %vm339, %v440, 0.0
        %v451 = vrot.slane %v450, 4
        %v452 = vadd.f32 %v450, %v451
        %v453 = vrot.slane %v452, 2
        %v454 = vadd.f32 %v452, %v453
        %v455 = vrot.slane %v454, 1
        %v456 = vadd.f32 %v454, %v455
        %v457 = vsel %vm339, %v441, 0.0
        %v458 = vrot.slane %v457, 4
        %v459 = vadd.f32 %v457, %v458
        %v460 = vrot.slane %v459, 2
        %v461 = vadd.f32 %v459, %v460
        %v462 = vrot.slane %v461, 1
        %v463 = vadd.f32 %v461, %v462
        %v464 = vsel %vm339, %v442, 0.0
        %v465 = vrot.slane %v464, 4
        %v466 = vadd.f32 %v464, %v465
        %v467 = vrot.slane %v466, 2
        %v468 = vadd.f32 %v466, %v467
        %v469 = vrot.slane %v468, 1
        %v470 = vadd.f32 %v468, %v469
        %v475 = vsel %vm429, %v456, %v449
        %v476 = vsel %vm431, %v463, %v475
        %v477 = vsel %vm433, %v470, %v476
        %v479 = vadd.f32 %v438, %v477
        %480 = vst [vmem:[%s312] sm:$0xf] %v479
        %v481 = vld [vmem:[%s319] sm:$0xf]
        %v482 = vsel %vm339, %v388, 0.0
        %v483 = vrot.slane %v482, 4
        %v484 = vadd.f32 %v482, %v483
        %v485 = vrot.slane %v484, 2
        %v486 = vadd.f32 %v484, %v485
        %v487 = vrot.slane %v486, 1
        %v488 = vadd.f32 %v486, %v487
        %v489 = vsel %vm339, %v389, 0.0
        %v490 = vrot.slane %v489, 4
        %v491 = vadd.f32 %v489, %v490
        %v492 = vrot.slane %v491, 2
        %v493 = vadd.f32 %v491, %v492
        %v494 = vrot.slane %v493, 1
        %v495 = vadd.f32 %v493, %v494
        %v496 = vsel %vm339, %v390, 0.0
        %v497 = vrot.slane %v496, 4
        %v498 = vadd.f32 %v496, %v497
        %v499 = vrot.slane %v498, 2
        %v500 = vadd.f32 %v498, %v499
        %v501 = vrot.slane %v500, 1
        %v502 = vadd.f32 %v500, %v501
        %v503 = vsel %vm339, %v391, 0.0
        %v504 = vrot.slane %v503, 4
        %v505 = vadd.f32 %v503, %v504
        %v506 = vrot.slane %v505, 2
        %v507 = vadd.f32 %v505, %v506
        %v508 = vrot.slane %v507, 1
        %v509 = vadd.f32 %v507, %v508
        %v514 = vsel %vm429, %v495, %v488
        %v515 = vsel %vm431, %v502, %v514
        %v516 = vsel %vm433, %v509, %v515
        %v518 = vadd.f32 %v481, %v516
        %519 = vst [vmem:[%s319] sm:$0xf] %v518
        %s520 = sand.u32 %s125, 1
        %s521 = scalar_lea.sflag [#allocation4], %s520
        %s522 = sand.u32 %s125, 1
        %s523 = smul.addr %s522, 4
        %s524 = scalar_lea.vmem [#allocation7], %s523
        %s525 = sand.u32 %s28, 1
        %s526 = scalar_lea.sflag [#allocation9], %s525
        %s527 = sand.u32 %s153, 1
        %s528 = smul.addr %s527, 4
        %s529 = scalar_lea.vmem [#allocation8], %s528
        %s530 = sand.u32 %s28, 1
        %s531 = scalar_lea.sflag [#allocation9], %s530
        %s532 = sand.u32 %s181, 1
        %s533 = smul.addr %s532, 4
        %s534 = scalar_lea.vmem [#allocation10], %s533
        // Predicated region
        $region41: #{tpu_custom_call.1} parent=27 // pred_check
          %p535 = pneg %p135
        $region42: #{tpu_custom_call.1} parent=27 // pred_check_branch
          %537 = sbr.rel (%p535) target = $region44
        $region43: #{tpu_custom_call.1} parent=27 // pred_region
          %539 = vsyncadd %s521, 0
          %s540 = sadd.s32 %s34, %s33
          %s541 = smul.addr %s540, 4
          %s542 = scalar_lea.hbm %s2, %s541
          %s544 = sshll.u32 %s524, 4
          %s545 = int_to_ptr.vmem [resolvable:$true] %s544
          %s546 = sshll.u32 %s542, 4
          %s547 = int_to_ptr.hbm [resolvable:$true] %s546
          %549 = dma.vmem_to_hbm [thread:$0]  %s545, 64, %s547, %s521
        $region44: #{tpu_custom_call.1} parent=27 // pred_fallthru
          _
        // Predicated region
        $region45: #{tpu_custom_call.1} parent=27 // pred_check
          %p550 = pneg %p163
        $region46: #{tpu_custom_call.1} parent=27 // pred_check_branch
          %552 = sbr.rel (%p550) target = $region48
        $region47: #{tpu_custom_call.1} parent=27 // pred_region
          %554 = vsyncadd %s526, 0
          %s555 = sadd.s32 %s34, %s33
          %s556 = smul.addr %s555, 4
          %s557 = scalar_lea.hbm %s3, %s556
          %s559 = sshll.u32 %s529, 4
          %s560 = int_to_ptr.vmem [resolvable:$true] %s559
          %s561 = sshll.u32 %s557, 4
          %s562 = int_to_ptr.hbm [resolvable:$true] %s561
          %564 = dma.vmem_to_hbm [thread:$0]  %s560, 64, %s562, %s526
        $region48: #{tpu_custom_call.1} parent=27 // pred_fallthru
          _
        // Predicated region
        $region49: #{tpu_custom_call.1} parent=27 // pred_check
          %p565 = pneg %p191
        $region50: #{tpu_custom_call.1} parent=27 // pred_check_branch
          %567 = sbr.rel (%p565) target = $region52
        $region51: #{tpu_custom_call.1} parent=27 // pred_region
          %569 = vsyncadd %s531, 0
          %s570 = sadd.s32 %s34, %s33
          %s571 = smul.addr %s570, 4
          %s572 = scalar_lea.hbm %s4, %s571
          %s574 = sshll.u32 %s534, 4
          %s575 = int_to_ptr.vmem [resolvable:$true] %s574
          %s576 = sshll.u32 %s572, 4
          %s577 = int_to_ptr.hbm [resolvable:$true] %s576
          %579 = dma.vmem_to_hbm [thread:$0]  %s575, 64, %s577, %s531
        $region52: #{tpu_custom_call.1} parent=27 // pred_fallthru
          _
      $region28: #{tpu_custom_call.1} parent=5 // pred_fallthru
        _
      %p580 = scmp.le.s32.totalorder 2, %s23
      // Predicated region
      $region53: #{tpu_custom_call.1} parent=5 // pred_check
        %p581 = pneg %p580
      $region54: #{tpu_custom_call.1} parent=5 // pred_check_branch
        %583 = sbr.rel (%p581) target = $region56
      $region55: #{tpu_custom_call.1} parent=5 // pred_region
        %s584 = ssub.s32 %s23, 2
        // Predicated region
        $region57: #{tpu_custom_call.1} parent=55 // pred_check
          %p585 = pneg %p141
        $region58: #{tpu_custom_call.1} parent=55 // pred_check_branch
          %587 = sbr.rel (%p585) target = $region60
        $region59: #{tpu_custom_call.1} parent=55 // pred_region
          %s588 = sand.u32 %s126, 1
          %s589 = scalar_lea.sflag [#allocation4], %s588
          %s590 = sand.u32 %s126, 1
          %s591 = smul.addr %s590, 4
          %s592 = scalar_lea.vmem [#allocation7], %s591
          %594 = dma.done %s589, 64
        $region60: #{tpu_custom_call.1} parent=55 // pred_fallthru
          _
        // Predicated region
        $region61: #{tpu_custom_call.1} parent=55 // pred_check
          %p595 = pneg %p169
        $region62: #{tpu_custom_call.1} parent=55 // pred_check_branch
          %597 = sbr.rel (%p595) target = $region64
        $region63: #{tpu_custom_call.1} parent=55 // pred_region
          %s598 = sand.u32 %s29, 1
          %s599 = scalar_lea.sflag [#allocation9], %s598
          %s600 = sand.u32 %s154, 1
          %s601 = smul.addr %s600, 4
          %s602 = scalar_lea.vmem [#allocation8], %s601
          %604 = dma.done %s599, 64
        $region64: #{tpu_custom_call.1} parent=55 // pred_fallthru
          _
        // Predicated region
        $region65: #{tpu_custom_call.1} parent=55 // pred_check
          %p605 = pneg %p197
        $region66: #{tpu_custom_call.1} parent=55 // pred_check_branch
          %607 = sbr.rel (%p605) target = $region68
        $region67: #{tpu_custom_call.1} parent=55 // pred_region
          %s608 = sand.u32 %s29, 1
          %s609 = scalar_lea.sflag [#allocation9], %s608
          %s610 = sand.u32 %s182, 1
          %s611 = smul.addr %s610, 4
          %s612 = scalar_lea.vmem [#allocation10], %s611
          %614 = dma.done %s609, 64
        $region68: #{tpu_custom_call.1} parent=55 // pred_fallthru
          _
      $region56: #{tpu_custom_call.1} parent=5 // pred_fallthru
        _
    $region6: #{tpu_custom_call.1} parent=1 // loop_footer
      %s27 = sadd.s32 1, %s23
    $region7: #{tpu_custom_call.1} parent=1 // loop_footer_branch
      %22 = sbr.rel target = $region3
    $region8: #{tpu_custom_call.1} parent=1 // loop_exit
      _
    %615 = vsyncpa [#allocation3], 1
    %s616 = scalar_lea.sflag [#allocation3], 1
    %617 = vsyncpa %s616, 1
    %618 = vsyncpa [#allocation6], 1
    %s619 = scalar_lea.sflag [#allocation6], 1
    %620 = vsyncpa %s619, 1
    %621 = vsyncpa [#allocation4], 1
    %s622 = scalar_lea.sflag [#allocation4], 1
    %623 = vsyncpa %s622, 1
    %624 = vsyncpa [#allocation9], 1
    %s625 = scalar_lea.sflag [#allocation9], 1
    %626 = vsyncpa %s625, 1

</llo_original>
